<compile_context>
chip_gen: v5e
topology: v5e:2x2
jax: 0.10.0
libtpu: 0.0.40
codegen_flags: <defaults>
</compile_context>

<pallas_src>
import jax
import jax.numpy as jnp
import numpy as np
from jax.experimental import pallas as pl
from jax.experimental.pallas import tpu as pltpu


def _dsc_fused_kernel(wl_ref, gb_ref, x_ref, o_ref, acc0, acc1, acc2):
    """Fused depthwise3x3 + pointwise1x1 + training-mode BatchNorm2d(1).

    Grid: (nG,) channel groups ("arbitrary": accumulate, epilogue at last step).

    wl_ref : VMEM (1, 9, L)  per-lane fused weights for this channel group
                             (pointwise + W-halo/wrap mask folded in)
    gb_ref : SMEM (2,)       [gamma, beta]
    x_ref  : VMEM (1, H, L)  input slab; lanes ordered (chan-in-group, batch, W)
    o_ref  : VMEM (H, N*W)   normalized output (resident; written at last step)
    acc*   : VMEM (H, L)     per-row-tap accumulators (persist across groups)
    """
    g = pl.program_id(0)
    n_g = pl.num_programs(0)
    _, h, lanes = x_ref.shape
    nw = o_ref.shape[1]
    grp = lanes // nw                      # channels stacked in this lane slab

    @pl.when(g == 0)
    def _():
        acc0[...] = jnp.zeros_like(acc0)
        acc1[...] = jnp.zeros_like(acc1)
        acc2[...] = jnp.zeros_like(acc2)

    xg = x_ref[0]                          # (H, L)
    # Lane-shifted views (column taps j=0 / j=2).  Lanes that wrapped across a
    # (channel, batch) block boundary are zeroed by the mask folded into wl.
    xm = jnp.concatenate([xg[:, lanes - 1:], xg[:, :lanes - 1]], axis=1)  # x[.., w-1]
    xp = jnp.concatenate([xg[:, 1:], xg[:, :1]], axis=1)                  # x[.., w+1]
    w9 = wl_ref[0]                         # (9, L)

    accs = (acc0, acc1, acc2)
    for i in range(3):                     # row taps; 9 whole-slab MACs total
        contrib = (xm * w9[3 * i + 0:3 * i + 1, :]
                   + xg * w9[3 * i + 1:3 * i + 2, :]
                   + xp * w9[3 * i + 2:3 * i + 3, :])
        accs[i][...] += contrib

    @pl.when(g == n_g - 1)
    def _():
        # Reduce the channel blocks stacked along lanes: (H, G*NW) -> (H, NW).
        def chan_reduce(a_ref):
            a = a_ref[...]
            r = a[:, 0:nw]
            for cg in range(1, grp):
                r = r + a[:, cg * nw:(cg + 1) * nw]
            return r

        y0 = chan_reduce(acc0)
        y1 = chan_reduce(acc1)
        y2 = chan_reduce(acc2)

        # Row-tap combine with zero top/bottom halo (H padding of the conv).
        zrow = jnp.zeros((1, nw), jnp.float32)
        y = (y1
             + jnp.concatenate([zrow, y0[0:h - 1, :]], axis=0)
             + jnp.concatenate([y2[1:h, :], zrow], axis=0))       # (H, NW)

        # Training-mode BatchNorm2d(1): global batch statistics, two-pass.
        cnt = h * nw                       # == N * H * W
        mean = jnp.sum(y) / cnt
        d = y - mean
        var = jnp.sum(d * d) / cnt         # biased variance
        scale = gb_ref[0] * jax.lax.rsqrt(var + 1e-5)
        o_ref[...] = d * scale + gb_ref[1]


@jax.jit
def depthwise_separable_conv(x_nchw, dw_w, dw_b, pw_w, pw_b, gamma, beta):
    """x_nchw: (N, Cin, H, W); dw_w: (Cin,1,3,3); pw_w: (Cout,Cin,1,1)."""
    N, Cin, H, W = x_nchw.shape
    Cout = pw_w.shape[0]
    assert Cout == 1, "BatchNorm2d(1) in the module constrains nout == 1"
    NW = N * W

    # dw_b / pw_b add a spatial constant which training-mode BN's mean
    # subtraction cancels exactly; BN running-stat side effects are not modeled.
    # TODO(synk): add the bias constant + running mean/var path for eval-mode BN.
    del dw_b, pw_b

    # Channel-group size: stack G channels (plus the whole batch) on lanes.
    # Largest divisor of Cin keeping the lane slab <= target_lanes.
    target_lanes = 2048
    G = 1
    for cand in range(1, Cin + 1):
        if Cin % cand == 0 and cand * NW <= max(NW, target_lanes):
            G = cand
    nG = Cin // G
    L = G * NW

    # Lane-stacked input layout: xs[g, h, (cg, n, w)] = x[n, g*G+cg, h, w].
    # (Single XLA relayout; replaces the old materialized jnp.pad.)
    xf = x_nchw.astype(jnp.float32)
    xs = jnp.transpose(xf, (1, 2, 0, 3))                    # (Cin, H, N, W)
    xs = xs.reshape(nG, G, H, NW)
    xs = jnp.transpose(xs, (0, 2, 1, 3)).reshape(nG, H, L)  # (nG, H, L)

    # Per-lane fused weights: pointwise folded into the 9 depthwise taps, with
    # the W-halo (and lane-wraparound) mask folded in so no padded copy exists.
    pw_c = pw_w[0, :, 0, 0].astype(jnp.float32)             # (Cin,)
    we = (dw_w[:, 0].astype(jnp.float32) * pw_c[:, None, None]).reshape(Cin, 9)
    wcol = jnp.arange(W)
    maskj = jnp.stack([wcol >= 1,                           # j=0 reads w-1
                       jnp.ones((W,), dtype=jnp.bool_),     # j=1 reads w
                       wcol <= W - 2])                      # j=2 reads w+1
    mask9 = jnp.tile(maskj.astype(jnp.float32), (3, 1))     # (9, W); row t -> j=t%3
    wl = we[:, :, None, None] * mask9[None, :, None, :]     # (Cin, 9, 1, W)
    wl = jnp.broadcast_to(wl, (Cin, 9, N, W)).reshape(nG, G, 9, NW)
    wl = jnp.transpose(wl, (0, 2, 1, 3)).reshape(nG, 9, L)  # (nG, 9, L)

    gb = jnp.stack([gamma.astype(jnp.float32)[0], beta.astype(jnp.float32)[0]])

    out_hnw = pl.pallas_call(
        _dsc_fused_kernel,
        grid=(nG,),
        in_specs=[
            pl.BlockSpec((1, 9, L), lambda g: (g, 0, 0)),            # weights
            pl.BlockSpec(memory_space=pltpu.MemorySpace.SMEM),       # gamma/beta
            pl.BlockSpec((1, H, L), lambda g: (g, 0, 0)),            # input slab
        ],
        out_specs=pl.BlockSpec((H, NW), lambda g: (0, 0)),           # resident
        out_shape=jax.ShapeDtypeStruct((H, NW), jnp.float32),
        scratch_shapes=[pltpu.VMEM((H, L), jnp.float32)] * 3,
        compiler_params=pltpu.CompilerParams(
            dimension_semantics=("arbitrary",)),
    )(wl, gb, xs)

    # (H, N*W) -> (N, 1, H, W): output-side layout plumbing, tiny.
    return out_hnw.reshape(H, N, W).transpose(1, 0, 2).reshape(N, Cout, H, W)


def _reference(x_nchw, dw_w, dw_b, pw_w, pw_b, gamma, beta):
    """Pure-JAX (XLA conv) reference of the PyTorch forward pass."""
    x = jnp.transpose(x_nchw, (0, 2, 3, 1))
    nin = x.shape[-1]
    wd_hwio = jnp.transpose(dw_w, (2, 3, 1, 0))             # (3,3,1,Cin)
    dw = jax.lax.conv_general_dilated(
        x, wd_hwio, (1, 1), 'SAME',
        dimension_numbers=('NHWC', 'HWIO', 'NHWC'),
        feature_group_count=nin) + dw_b
    wp_hwio = jnp.transpose(pw_w, (2, 3, 1, 0))             # (1,1,Cin,Cout)
    pw = jax.lax.conv_general_dilated(
        dw, wp_hwio, (1, 1), 'VALID',
        dimension_numbers=('NHWC', 'HWIO', 'NHWC')) + pw_b
    mean = jnp.mean(pw, axis=(0, 1, 2), keepdims=True)
    var = jnp.mean((pw - mean) ** 2, axis=(0, 1, 2), keepdims=True)
    out = (pw - mean) * jax.lax.rsqrt(var + 1e-5) * gamma + beta
    return jnp.transpose(out, (0, 3, 1, 2))


if __name__ == "__main__":
    key = jax.random.PRNGKey(0)
    N, Cin, H, W = 2, 4, 16, 16
    Cout = 1  # BatchNorm2d(1) in the module constrains nout == 1

    kx, kdw, kdb, kpw, kpb = jax.random.split(key, 5)
    x = jax.random.normal(kx, (N, Cin, H, W), jnp.float32)
    # Parameter shapes exactly as nn.Conv2d / nn.BatchNorm2d would create them.
    dw_w = 0.1 * jax.random.normal(kdw, (Cin, 1, 3, 3), jnp.float32)
    dw_b = 0.1 * jax.random.normal(kdb, (Cin,), jnp.float32)
    pw_w = 0.1 * jax.random.normal(kpw, (Cout, Cin, 1, 1), jnp.float32)
    pw_b = 0.1 * jax.random.normal(kpb, (Cout,), jnp.float32)
    gamma = jnp.ones((Cout,), jnp.float32)   # BatchNorm2d default affine init
    beta = jnp.zeros((Cout,), jnp.float32)

    out = jax.block_until_ready(
        depthwise_separable_conv(x, dw_w, dw_b, pw_w, pw_b, gamma, beta))
    ref = _reference(x, dw_w, dw_b, pw_w, pw_b, gamma, beta)

    assert out.shape == (N, Cout, H, W)
    np.testing.assert_allclose(np.asarray(out), np.asarray(ref),
                               atol=1e-4, rtol=1e-4)
    print("KERNEL_OK")
</pallas_src>

<mosaic_0001>
module attributes {stable_mosaic.version = 11 : i64} {
  func.func @_dsc_fused_kernel(%arg0: i32, %arg1: memref<1x9x128xf32, #tpu.memory_space<vmem>>, %arg2: memref<2xf32, #tpu.memory_space<smem>>, %arg3: memref<1x16x128xf32, #tpu.memory_space<vmem>>, %arg4: memref<16x32xf32, #tpu.memory_space<vmem>>, %arg5: memref<16x128xf32, #tpu.memory_space<vmem>>, %arg6: memref<16x128xf32, #tpu.memory_space<vmem>>, %arg7: memref<16x128xf32, #tpu.memory_space<vmem>>) attributes {dimension_semantics = [#tpu.dimension_semantics<arbitrary>], iteration_bounds = array<i64: 1>, scalar_prefetch = 0 : i64, scratch_operands = 3 : i64, tpu.core_type = #tpu.core_type<tc>, window_params = [{transform_indices = @transform_0, window_bounds = array<i64: 1, 9, 128>}, {transform_indices = @transform_1, window_bounds = array<i64: 2>}, {transform_indices = @transform_2, window_bounds = array<i64: 1, 16, 128>}, {pipeline_mode = #tpu.pipeline_mode<synchronous>, transform_indices = @transform_3, window_bounds = array<i64: 16, 32>}]} {
    %c0_i32 = arith.constant 0 : i32
    %0 = arith.cmpi eq, %arg0, %c0_i32 : i32
    %1 = arith.extui %0 : i1 to i32
    %c0_i32_0 = arith.constant 0 : i32
    %2 = arith.cmpi ne, %1, %c0_i32_0 : i32
    scf.if %2 {
      %cst = arith.constant 0.000000e+00 : f32
      %58 = vector.broadcast %cst : f32 to vector<16x128xf32>
      %c0_20 = arith.constant 0 : index
      %c0_21 = arith.constant 0 : index
      %59 = vector.load %arg5[%c0_20, %c0_21] : memref<16x128xf32, #tpu.memory_space<vmem>>, vector<16x128xf32>
      tpu.vector_store %arg5[%c0_20, %c0_21], %58 {strides = array<i32>} : memref<16x128xf32, #tpu.memory_space<vmem>>, vector<16x128xf32>,
      %cst_22 = arith.constant 0.000000e+00 : f32
      %60 = vector.broadcast %cst_22 : f32 to vector<16x128xf32>
      %c0_23 = arith.constant 0 : index
      %c0_24 = arith.constant 0 : index
      %61 = vector.load %arg6[%c0_23, %c0_24] : memref<16x128xf32, #tpu.memory_space<vmem>>, vector<16x128xf32>
      tpu.vector_store %arg6[%c0_23, %c0_24], %60 {strides = array<i32>} : memref<16x128xf32, #tpu.memory_space<vmem>>, vector<16x128xf32>,
      %cst_25 = arith.constant 0.000000e+00 : f32
      %62 = vector.broadcast %cst_25 : f32 to vector<16x128xf32>
      %c0_26 = arith.constant 0 : index
      %c0_27 = arith.constant 0 : index
      %63 = vector.load %arg7[%c0_26, %c0_27] : memref<16x128xf32, #tpu.memory_space<vmem>>, vector<16x128xf32>
      tpu.vector_store %arg7[%c0_26, %c0_27], %62 {strides = array<i32>} : memref<16x128xf32, #tpu.memory_space<vmem>>, vector<16x128xf32>,
    } else {
    }
    %c0 = arith.constant 0 : index
    %c0_1 = arith.constant 0 : index
    %c0_2 = arith.constant 0 : index
    %3 = vector.load %arg3[%c0, %c0_1, %c0_2] : memref<1x16x128xf32, #tpu.memory_space<vmem>>, vector<1x16x128xf32>
    %4 = vector.shape_cast %3 : vector<1x16x128xf32> to vector<16x128xf32>
    %5 = vector.extract_strided_slice %4 {offsets = [0, 127], sizes = [16, 1], strides = [1, 1]} : vector<16x128xf32> to vector<16x1xf32>
    %6 = vector.extract_strided_slice %4 {offsets = [0, 0], sizes = [16, 127], strides = [1, 1]} : vector<16x128xf32> to vector<16x127xf32>
    %7 = tpu.concatenate %5, %6 in 1 : vector<16x1xf32>, vector<16x127xf32> -> vector<16x128xf32>
    %8 = vector.extract_strided_slice %4 {offsets = [0, 1], sizes = [16, 127], strides = [1, 1]} : vector<16x128xf32> to vector<16x127xf32>
    %9 = vector.extract_strided_slice %4 {offsets = [0, 0], sizes = [16, 1], strides = [1, 1]} : vector<16x128xf32> to vector<16x1xf32>
    %10 = tpu.concatenate %8, %9 in 1 : vector<16x127xf32>, vector<16x1xf32> -> vector<16x128xf32>
    %c0_3 = arith.constant 0 : index
    %c0_4 = arith.constant 0 : index
    %c0_5 = arith.constant 0 : index
    %11 = vector.load %arg1[%c0_3, %c0_4, %c0_5] : memref<1x9x128xf32, #tpu.memory_space<vmem>>, vector<1x9x128xf32>
    %12 = vector.shape_cast %11 : vector<1x9x128xf32> to vector<9x128xf32>
    %13 = vector.extract_strided_slice %12 {offsets = [0, 0], sizes = [1, 128], strides = [1, 1]} : vector<9x128xf32> to vector<1x128xf32>
    %14 = vector.broadcast %13 : vector<1x128xf32> to vector<16x128xf32>
    %15 = arith.mulf %7, %14 : vector<16x128xf32>
    %16 = vector.extract_strided_slice %12 {offsets = [1, 0], sizes = [1, 128], strides = [1, 1]} : vector<9x128xf32> to vector<1x128xf32>
    %17 = vector.broadcast %16 : vector<1x128xf32> to vector<16x128xf32>
    %18 = arith.mulf %4, %17 : vector<16x128xf32>
    %19 = arith.addf %15, %18 : vector<16x128xf32>
    %20 = vector.extract_strided_slice %12 {offsets = [2, 0], sizes = [1, 128], strides = [1, 1]} : vector<9x128xf32> to vector<1x128xf32>
    %21 = vector.broadcast %20 : vector<1x128xf32> to vector<16x128xf32>
    %22 = arith.mulf %10, %21 : vector<16x128xf32>
    %23 = arith.addf %19, %22 : vector<16x128xf32>
    %c0_6 = arith.constant 0 : index
    %c0_7 = arith.constant 0 : index
    %24 = vector.load %arg5[%c0_6, %c0_7] : memref<16x128xf32, #tpu.memory_space<vmem>>, vector<16x128xf32>
    %25 = arith.addf %24, %23 : vector<16x128xf32>
    %c0_8 = arith.constant 0 : index
    %c0_9 = arith.constant 0 : index
    %26 = vector.load %arg5[%c0_8, %c0_9] : memref<16x128xf32, #tpu.memory_space<vmem>>, vector<16x128xf32>
    tpu.vector_store %arg5[%c0_8, %c0_9], %25 {strides = array<i32>} : memref<16x128xf32, #tpu.memory_space<vmem>>, vector<16x128xf32>,
    %27 = vector.extract_strided_slice %12 {offsets = [3, 0], sizes = [1, 128], strides = [1, 1]} : vector<9x128xf32> to vector<1x128xf32>
    %28 = vector.broadcast %27 : vector<1x128xf32> to vector<16x128xf32>
    %29 = arith.mulf %7, %28 : vector<16x128xf32>
    %30 = vector.extract_strided_slice %12 {offsets = [4, 0], sizes = [1, 128], strides = [1, 1]} : vector<9x128xf32> to vector<1x128xf32>
    %31 = vector.broadcast %30 : vector<1x128xf32> to vector<16x128xf32>
    %32 = arith.mulf %4, %31 : vector<16x128xf32>
    %33 = arith.addf %29, %32 : vector<16x128xf32>
    %34 = vector.extract_strided_slice %12 {offsets = [5, 0], sizes = [1, 128], strides = [1, 1]} : vector<9x128xf32> to vector<1x128xf32>
    %35 = vector.broadcast %34 : vector<1x128xf32> to vector<16x128xf32>
    %36 = arith.mulf %10, %35 : vector<16x128xf32>
    %37 = arith.addf %33, %36 : vector<16x128xf32>
    %c0_10 = arith.constant 0 : index
    %c0_11 = arith.constant 0 : index
    %38 = vector.load %arg6[%c0_10, %c0_11] : memref<16x128xf32, #tpu.memory_space<vmem>>, vector<16x128xf32>
    %39 = arith.addf %38, %37 : vector<16x128xf32>
    %c0_12 = arith.constant 0 : index
    %c0_13 = arith.constant 0 : index
    %40 = vector.load %arg6[%c0_12, %c0_13] : memref<16x128xf32, #tpu.memory_space<vmem>>, vector<16x128xf32>
    tpu.vector_store %arg6[%c0_12, %c0_13], %39 {strides = array<i32>} : memref<16x128xf32, #tpu.memory_space<vmem>>, vector<16x128xf32>,
    %41 = vector.extract_strided_slice %12 {offsets = [6, 0], sizes = [1, 128], strides = [1, 1]} : vector<9x128xf32> to vector<1x128xf32>
    %42 = vector.broadcast %41 : vector<1x128xf32> to vector<16x128xf32>
    %43 = arith.mulf %7, %42 : vector<16x128xf32>
    %44 = vector.extract_strided_slice %12 {offsets = [7, 0], sizes = [1, 128], strides = [1, 1]} : vector<9x128xf32> to vector<1x128xf32>
    %45 = vector.broadcast %44 : vector<1x128xf32> to vector<16x128xf32>
    %46 = arith.mulf %4, %45 : vector<16x128xf32>
    %47 = arith.addf %43, %46 : vector<16x128xf32>
    %48 = vector.extract_strided_slice %12 {offsets = [8, 0], sizes = [1, 128], strides = [1, 1]} : vector<9x128xf32> to vector<1x128xf32>
    %49 = vector.broadcast %48 : vector<1x128xf32> to vector<16x128xf32>
    %50 = arith.mulf %10, %49 : vector<16x128xf32>
    %51 = arith.addf %47, %50 : vector<16x128xf32>
    %c0_14 = arith.constant 0 : index
    %c0_15 = arith.constant 0 : index
    %52 = vector.load %arg7[%c0_14, %c0_15] : memref<16x128xf32, #tpu.memory_space<vmem>>, vector<16x128xf32>
    %53 = arith.addf %52, %51 : vector<16x128xf32>
    %c0_16 = arith.constant 0 : index
    %c0_17 = arith.constant 0 : index
    %54 = vector.load %arg7[%c0_16, %c0_17] : memref<16x128xf32, #tpu.memory_space<vmem>>, vector<16x128xf32>
    tpu.vector_store %arg7[%c0_16, %c0_17], %53 {strides = array<i32>} : memref<16x128xf32, #tpu.memory_space<vmem>>, vector<16x128xf32>,
    %c0_i32_18 = arith.constant 0 : i32
    %55 = arith.cmpi eq, %arg0, %c0_i32_18 : i32
    %56 = arith.extui %55 : i1 to i32
    %c0_i32_19 = arith.constant 0 : i32
    %57 = arith.cmpi ne, %56, %c0_i32_19 : i32
    scf.if %57 {
      %c0_20 = arith.constant 0 : index
      %c0_21 = arith.constant 0 : index
      %58 = vector.load %arg5[%c0_20, %c0_21] : memref<16x128xf32, #tpu.memory_space<vmem>>, vector<16x128xf32>
      %59 = vector.extract_strided_slice %58 {offsets = [0, 0], sizes = [16, 32], strides = [1, 1]} : vector<16x128xf32> to vector<16x32xf32>
      %60 = vector.extract_strided_slice %58 {offsets = [0, 32], sizes = [16, 32], strides = [1, 1]} : vector<16x128xf32> to vector<16x32xf32>
      %61 = arith.addf %59, %60 : vector<16x32xf32>
      %62 = vector.extract_strided_slice %58 {offsets = [0, 64], sizes = [16, 32], strides = [1, 1]} : vector<16x128xf32> to vector<16x32xf32>
      %63 = arith.addf %61, %62 : vector<16x32xf32>
      %64 = vector.extract_strided_slice %58 {offsets = [0, 96], sizes = [16, 32], strides = [1, 1]} : vector<16x128xf32> to vector<16x32xf32>
      %65 = arith.addf %63, %64 : vector<16x32xf32>
      %c0_22 = arith.constant 0 : index
      %c0_23 = arith.constant 0 : index
      %66 = vector.load %arg6[%c0_22, %c0_23] : memref<16x128xf32, #tpu.memory_space<vmem>>, vector<16x128xf32>
      %67 = vector.extract_strided_slice %66 {offsets = [0, 0], sizes = [16, 32], strides = [1, 1]} : vector<16x128xf32> to vector<16x32xf32>
      %68 = vector.extract_strided_slice %66 {offsets = [0, 32], sizes = [16, 32], strides = [1, 1]} : vector<16x128xf32> to vector<16x32xf32>
      %69 = arith.addf %67, %68 : vector<16x32xf32>
      %70 = vector.extract_strided_slice %66 {offsets = [0, 64], sizes = [16, 32], strides = [1, 1]} : vector<16x128xf32> to vector<16x32xf32>
      %71 = arith.addf %69, %70 : vector<16x32xf32>
      %72 = vector.extract_strided_slice %66 {offsets = [0, 96], sizes = [16, 32], strides = [1, 1]} : vector<16x128xf32> to vector<16x32xf32>
      %73 = arith.addf %71, %72 : vector<16x32xf32>
      %c0_24 = arith.constant 0 : index
      %c0_25 = arith.constant 0 : index
      %74 = vector.load %arg7[%c0_24, %c0_25] : memref<16x128xf32, #tpu.memory_space<vmem>>, vector<16x128xf32>
      %75 = vector.extract_strided_slice %74 {offsets = [0, 0], sizes = [16, 32], strides = [1, 1]} : vector<16x128xf32> to vector<16x32xf32>
      %76 = vector.extract_strided_slice %74 {offsets = [0, 32], sizes = [16, 32], strides = [1, 1]} : vector<16x128xf32> to vector<16x32xf32>
      %77 = arith.addf %75, %76 : vector<16x32xf32>
      %78 = vector.extract_strided_slice %74 {offsets = [0, 64], sizes = [16, 32], strides = [1, 1]} : vector<16x128xf32> to vector<16x32xf32>
      %79 = arith.addf %77, %78 : vector<16x32xf32>
      %80 = vector.extract_strided_slice %74 {offsets = [0, 96], sizes = [16, 32], strides = [1, 1]} : vector<16x128xf32> to vector<16x32xf32>
      %81 = arith.addf %79, %80 : vector<16x32xf32>
      %cst = arith.constant 0.000000e+00 : f32
      %82 = vector.broadcast %cst : f32 to vector<1x32xf32>
      %83 = vector.extract_strided_slice %65 {offsets = [0, 0], sizes = [15, 32], strides = [1, 1]} : vector<16x32xf32> to vector<15x32xf32>
      %84 = tpu.concatenate %82, %83 in 0 : vector<1x32xf32>, vector<15x32xf32> -> vector<16x32xf32>
      %85 = arith.addf %73, %84 : vector<16x32xf32>
      %86 = vector.extract_strided_slice %81 {offsets = [1, 0], sizes = [15, 32], strides = [1, 1]} : vector<16x32xf32> to vector<15x32xf32>
      %87 = tpu.concatenate %86, %82 in 0 : vector<15x32xf32>, vector<1x32xf32> -> vector<16x32xf32>
      %88 = arith.addf %85, %87 : vector<16x32xf32>
      %89 = vector.shape_cast %88 : vector<16x32xf32> to vector<1x16x32xf32>
      %cst_26 = arith.constant dense<0.000000e+00> : vector<1xf32>
      %90 = vector.multi_reduction <add>, %89, %cst_26 [1, 2] : vector<1x16x32xf32> to vector<1xf32>
      %91 = vector.shape_cast %90 : vector<1xf32> to vector<1x1x1xf32>
      %92 = vector.extract %91[0, 0, 0] : f32 from vector<1x1x1xf32>
      %cst_27 = arith.constant 5.120000e+02 : f32
      %93 = arith.divf %92, %cst_27 : f32
      %94 = vector.broadcast %93 : f32 to vector<16x32xf32>
      %95 = arith.subf %88, %94 : vector<16x32xf32>
      %96 = arith.mulf %95, %95 : vector<16x32xf32>
      %97 = vector.shape_cast %96 : vector<16x32xf32> to vector<1x16x32xf32>
      %cst_28 = arith.constant dense<0.000000e+00> : vector<1xf32>
      %98 = vector.multi_reduction <add>, %97, %cst_28 [1, 2] : vector<1x16x32xf32> to vector<1xf32>
      %99 = vector.shape_cast %98 : vector<1xf32> to vector<1x1x1xf32>
      %100 = vector.extract %99[0, 0, 0] : f32 from vector<1x1x1xf32>
      %cst_29 = arith.constant 5.120000e+02 : f32
      %101 = arith.divf %100, %cst_29 : f32
      %c0_30 = arith.constant 0 : index
      %102 = memref.load %arg2[%c0_30] : memref<2xf32, #tpu.memory_space<smem>>
      %cst_31 = arith.constant 9.99999974E-6 : f32
      %103 = arith.addf %101, %cst_31 : f32
      %104 = math.rsqrt %103 : f32
      %105 = arith.mulf %102, %104 : f32
      %106 = vector.broadcast %105 : f32 to vector<16x32xf32>
      %107 = arith.mulf %95, %106 : vector<16x32xf32>
      %c1 = arith.constant 1 : index
      %108 = memref.load %arg2[%c1] : memref<2xf32, #tpu.memory_space<smem>>
      %109 = vector.broadcast %108 : f32 to vector<16x32xf32>
      %110 = arith.addf %107, %109 : vector<16x32xf32>
      %c0_32 = arith.constant 0 : index
      %c0_33 = arith.constant 0 : index
      %111 = vector.load %arg4[%c0_32, %c0_33] : memref<16x32xf32, #tpu.memory_space<vmem>>, vector<16x32xf32>
      tpu.vector_store %arg4[%c0_32, %c0_33], %110 {strides = array<i32>} : memref<16x32xf32, #tpu.memory_space<vmem>>, vector<16x32xf32>,
    } else {
    }
    return
  }
  func.func @transform_0(%arg0: i32) -> (i32, i32, i32) {
    %c0_i32 = arith.constant 0 : i32
    %c0_i32_0 = arith.constant 0 : i32
    %c0_i32_1 = arith.constant 0 : i32
    return %arg0, %c0_i32, %c0_i32_0 : i32, i32, i32
  }
  func.func @transform_1(%arg0: i32) -> i32 {
    %c0_i32 = arith.constant 0 : i32
    %c0_i32_0 = arith.constant 0 : i32
    return %c0_i32 : i32
  }
  func.func @transform_2(%arg0: i32) -> (i32, i32, i32) {
    %c0_i32 = arith.constant 0 : i32
    %c0_i32_0 = arith.constant 0 : i32
    %c0_i32_1 = arith.constant 0 : i32
    return %arg0, %c0_i32, %c0_i32_0 : i32, i32, i32
  }
  func.func @transform_3(%arg0: i32) -> (i32, i32) {
    %c0_i32 = arith.constant 0 : i32
    %c0_i32_0 = arith.constant 0 : i32
    %c0_i32_1 = arith.constant 0 : i32
    return %c0_i32, %c0_i32_0 : i32, i32
  }
}

</mosaic_0001>

<llo_original>
// kernel: depthwise_separable_conv.1
$region0: #{depthwise_separable_conv.1}
  #allocation0 [shape = 'u32[]', space=smem, size = 0x4, offset = 0x4, fixed_abs, tag = 'smem constant byte address 0x4 - core index']
  #allocation1 [shape = 'u32[72,128]{1,0:T(1,128)}', space=vmem, size = 0x9000, scoped, tag = 'internal scratch']
  #allocation2 [shape = 'f32[16,128]{1,0:T(8,128)}', space=vmem, size = 0x2000, scoped, tag = 'scratch operand']
  #allocation3 [shape = 'f32[16,128]{1,0:T(8,128)}', space=vmem, size = 0x2000, scoped, tag = 'scratch operand']
  #allocation4 [shape = 'f32[16,128]{1,0:T(8,128)}', space=vmem, size = 0x2000, scoped, tag = 'scratch operand']
  %s0 = inlined_call_operand.vmem [shape: f32[1,9,128], index: 0, kind: input, shape index: {}]
  %s1 = inlined_call_operand.vmem [shape: f32[2], index: 1, kind: input, shape index: {}]
  %s2 = inlined_call_operand.vmem [shape: f32[1,16,128], index: 2, kind: input, shape index: {}]
  %s3 = inlined_call_operand.vmem [shape: f32[16,32], index: 3, kind: output, shape index: {}]
  %s4 = sld [smem:[#allocation0]]
  $region34: #{depthwise_separable_conv.1} parent=0
    _
  %s6 = ssub.s32 1, %s4
  %s7 = scalar_select 0, %s6, %s4
  $region1: #{depthwise_separable_conv.1} parent=0
    #allocation5 [shape = 'u8[512]{0}', space=smem, size = 0x200, scoped, tag = 'input window, operand 1, single buffered']
    #allocation6 [shape = 's32[1]{0}', space=sflag, size = 0x4, scoped, tag = 'scoped memory for depthwise_separable_conv.1']
    %8 = vsyncpa [#allocation6], 0
    // Predicated region
    $region2: #{depthwise_separable_conv.1} parent=1 // pred_check
      _
    $region3: #{depthwise_separable_conv.1} parent=1 // pred_check_branch
      %10 = sbr.rel (0) target = $region5
    $region4: #{depthwise_separable_conv.1} parent=1 // pred_region
      _
    $region5: #{depthwise_separable_conv.1} parent=1 // pred_fallthru
      _
    // Predicated region
    $region6: #{depthwise_separable_conv.1} parent=1 // pred_check
      _
    $region7: #{depthwise_separable_conv.1} parent=1 // pred_check_branch
      %12 = sbr.rel (0) target = $region9
    $region8: #{depthwise_separable_conv.1} parent=1 // pred_region
      %14 = vsyncadd [#allocation6], 0
      %s16 = sshll.u32 %s1, 4
      %s17 = int_to_ptr.vmem [resolvable:$true] %s16
      %19 = dma.vmem_to_smem %s17, 16, [#allocation5], [#allocation6]
    $region9: #{depthwise_separable_conv.1} parent=1 // pred_fallthru
      _
    // Predicated region
    $region10: #{depthwise_separable_conv.1} parent=1 // pred_check
      _
    $region11: #{depthwise_separable_conv.1} parent=1 // pred_check_branch
      %21 = sbr.rel (0) target = $region13
    $region12: #{depthwise_separable_conv.1} parent=1 // pred_region
      _
    $region13: #{depthwise_separable_conv.1} parent=1 // pred_fallthru
      _
    // Predicated region
    $region14: #{depthwise_separable_conv.1} parent=1 // pred_check
      _
    $region15: #{depthwise_separable_conv.1} parent=1 // pred_check_branch
      %23 = sbr.rel (0) target = $region17
    $region16: #{depthwise_separable_conv.1} parent=1 // pred_region
      %25 = dma.done [#allocation6], 16
    $region17: #{depthwise_separable_conv.1} parent=1 // pred_fallthru
      _
    %26 = sfence
    %p27 = scmp.eq.s32.totalorder 0, 0
    // Predicated region
    $region18: #{depthwise_separable_conv.1} parent=1 // pred_check
      %p28 = pneg %p27
    $region19: #{depthwise_separable_conv.1} parent=1 // pred_check_branch
      %30 = sbr.rel (%p28) target = $region21
    $region20: #{depthwise_separable_conv.1} parent=1 // pred_region
      %31 = vst [vmem:[#allocation2] sm:$0xff] 0.0
      %32 = vst [vmem:[#allocation2 + $0x8] sm:$0xff] 0.0
      %33 = vst [vmem:[#allocation3] sm:$0xff] 0.0
      %34 = vst [vmem:[#allocation3 + $0x8] sm:$0xff] 0.0
      %35 = vst [vmem:[#allocation4] sm:$0xff] 0.0
      %36 = vst [vmem:[#allocation4 + $0x8] sm:$0xff] 0.0
    $region21: #{depthwise_separable_conv.1} parent=1 // pred_fallthru
      _
    %v37 = vld [vmem:[%s2] sm:$0xff]
    %v38 = vld [vmem:[%s2 + $0x8] sm:$0xff]
    %41 = vrot.lane.b32.xlu0 %v37, 1
    %v42 = vpop.permute.xlu0 %41
    %43 = vrot.lane.b32.xlu0 %v38, 1
    %v44 = vpop.permute.xlu0 %43
    %47 = vrot.lane.b32.xlu0 %v37, 127
    %v48 = vpop.permute.xlu0 %47
    %49 = vrot.lane.b32.xlu0 %v38, 127
    %v50 = vpop.permute.xlu0 %49
    %v53 = vld [vmem:[%s0] sm:$0xff]
    %v54 = vld [vmem:[%s0 + $0x8] sm:$0x1]
    %v55 = vperm.slane %v53, 0
    %v56 = vmul.f32 %v42, %v55
    %v57 = vmul.f32 %v44, %v55
    %v58 = vperm.slane %v53, 1
    %v59 = vmul.f32 %v37, %v58
    %v60 = vmul.f32 %v38, %v58
    %v61 = vadd.f32 %v56, %v59
    %v62 = vadd.f32 %v57, %v60
    %v63 = vperm.slane %v53, 2
    %v64 = vmul.f32 %v48, %v63
    %v65 = vmul.f32 %v50, %v63
    %v66 = vadd.f32 %v61, %v64
    %v67 = vadd.f32 %v62, %v65
    %v68 = vld [vmem:[#allocation2] sm:$0xff]
    %v69 = vld [vmem:[#allocation2 + $0x8] sm:$0xff]
    %v70 = vadd.f32 %v68, %v66
    %v71 = vadd.f32 %v69, %v67
    %72 = vst [vmem:[#allocation2] sm:$0xff] %v70
    %73 = vst [vmem:[#allocation2 + $0x8] sm:$0xff] %v71
    %v74 = vperm.slane %v53, 3
    %v75 = vmul.f32 %v42, %v74
    %v76 = vmul.f32 %v44, %v74
    %v77 = vperm.slane %v53, 4
    %v78 = vmul.f32 %v37, %v77
    %v79 = vmul.f32 %v38, %v77
    %v80 = vadd.f32 %v75, %v78
    %v81 = vadd.f32 %v76, %v79
    %v82 = vperm.slane %v53, 5
    %v83 = vmul.f32 %v48, %v82
    %v84 = vmul.f32 %v50, %v82
    %v85 = vadd.f32 %v80, %v83
    %v86 = vadd.f32 %v81, %v84
    %v87 = vld [vmem:[#allocation3] sm:$0xff]
    %v88 = vld [vmem:[#allocation3 + $0x8] sm:$0xff]
    %v89 = vadd.f32 %v87, %v85
    %v90 = vadd.f32 %v88, %v86
    %91 = vst [vmem:[#allocation3] sm:$0xff] %v89
    %92 = vst [vmem:[#allocation3 + $0x8] sm:$0xff] %v90
    %v93 = vperm.slane %v53, 6
    %v94 = vmul.f32 %v42, %v93
    %v95 = vmul.f32 %v44, %v93
    %v96 = vperm.slane %v53, 7
    %v97 = vmul.f32 %v37, %v96
    %v98 = vmul.f32 %v38, %v96
    %v99 = vadd.f32 %v94, %v97
    %v100 = vadd.f32 %v95, %v98
    %v101 = vperm.slane %v54, 0
    %v102 = vmul.f32 %v48, %v101
    %v103 = vmul.f32 %v50, %v101
    %v104 = vadd.f32 %v99, %v102
    %v105 = vadd.f32 %v100, %v103
    %v106 = vld [vmem:[#allocation4] sm:$0xff]
    %v107 = vld [vmem:[#allocation4 + $0x8] sm:$0xff]
    %v108 = vadd.f32 %v106, %v104
    %v109 = vadd.f32 %v107, %v105
    %110 = vst [vmem:[#allocation4] sm:$0xff] %v108
    %111 = vst [vmem:[#allocation4 + $0x8] sm:$0xff] %v109
    // Predicated region
    $region22: #{depthwise_separable_conv.1} parent=1 // pred_check
      %p112 = pneg %p27
    $region23: #{depthwise_separable_conv.1} parent=1 // pred_check_branch
      %114 = sbr.rel (%p112) target = $region25
    $region24: #{depthwise_separable_conv.1} parent=1 // pred_region
      %v115 = vld [vmem:[#allocation2] sm:$0xff]
      %v116 = vld [vmem:[#allocation2 + $0x8] sm:$0xff]
      %119 = vrot.lane.b32.xlu0 %v115, 96
      %v120 = vpop.permute.xlu0 %119
      %121 = vrot.lane.b32.xlu0 %v116, 96
      %v122 = vpop.permute.xlu0 %121
      %v125 = vadd.f32 %v115, %v120
      %v126 = vadd.f32 %v116, %v122
      %127 = vrot.lane.b32.xlu0 %v115, 64
      %v128 = vpop.permute.xlu0 %127
      %129 = vrot.lane.b32.xlu0 %v116, 64
      %v130 = vpop.permute.xlu0 %129
      %v133 = vadd.f32 %v125, %v128
      %v134 = vadd.f32 %v126, %v130
      %135 = vrot.lane.b32.xlu0 %v115, 32
      %v136 = vpop.permute.xlu0 %135
      %137 = vrot.lane.b32.xlu0 %v116, 32
      %v138 = vpop.permute.xlu0 %137
      %v141 = vadd.f32 %v133, %v136
      %v142 = vadd.f32 %v134, %v138
      %v143 = vld [vmem:[#allocation3] sm:$0xff]
      %v144 = vld [vmem:[#allocation3 + $0x8] sm:$0xff]
      %147 = vrot.lane.b32.xlu0 %v143, 96
      %v148 = vpop.permute.xlu0 %147
      %149 = vrot.lane.b32.xlu0 %v144, 96
      %v150 = vpop.permute.xlu0 %149
      %v153 = vadd.f32 %v143, %v148
      %v154 = vadd.f32 %v144, %v150
      %155 = vrot.lane.b32.xlu0 %v143, 64
      %v156 = vpop.permute.xlu0 %155
      %157 = vrot.lane.b32.xlu0 %v144, 64
      %v158 = vpop.permute.xlu0 %157
      %v161 = vadd.f32 %v153, %v156
      %v162 = vadd.f32 %v154, %v158
      %163 = vrot.lane.b32.xlu0 %v143, 32
      %v164 = vpop.permute.xlu0 %163
      %165 = vrot.lane.b32.xlu0 %v144, 32
      %v166 = vpop.permute.xlu0 %165
      %v169 = vadd.f32 %v161, %v164
      %v170 = vadd.f32 %v162, %v166
      %v171 = vld [vmem:[#allocation4] sm:$0xff]
      %v172 = vld [vmem:[#allocation4 + $0x8] sm:$0xff]
      %175 = vrot.lane.b32.xlu0 %v171, 96
      %v176 = vpop.permute.xlu0 %175
      %177 = vrot.lane.b32.xlu0 %v172, 96
      %v178 = vpop.permute.xlu0 %177
      %v181 = vadd.f32 %v171, %v176
      %v182 = vadd.f32 %v172, %v178
      %183 = vrot.lane.b32.xlu0 %v171, 64
      %v184 = vpop.permute.xlu0 %183
      %185 = vrot.lane.b32.xlu0 %v172, 64
      %v186 = vpop.permute.xlu0 %185
      %v189 = vadd.f32 %v181, %v184
      %v190 = vadd.f32 %v182, %v186
      %191 = vrot.lane.b32.xlu0 %v171, 32
      %v192 = vpop.permute.xlu0 %191
      %193 = vrot.lane.b32.xlu0 %v172, 32
      %v194 = vpop.permute.xlu0 %193
      %v197 = vadd.f32 %v189, %v192
      %v198 = vadd.f32 %v190, %v194
      %vm201 = vcmask 1040384
      %v202 = vrot.slane %v141, 7
      %v203 = vrot.slane %v142, 7
      %v204 = vsel %vm201, %v202, %v203
      %v207 = vsel %vm201, 0.0, %v202
      %v208 = vadd.f32 %v169, %v207
      %v209 = vadd.f32 %v170, %v204
      %vm212 = vcmask 1046528
      %v213 = vrot.slane %v197, 1
      %v214 = vrot.slane %v198, 1
      %v215 = vsel %vm212, %v213, %v214
      %v218 = vsel %vm212, %v214, 0.0
      %v219 = vadd.f32 %v208, %v215
      %v220 = vadd.f32 %v209, %v218
      %vm221 = vcmask 261120
      %v222 = vsel %vm221, %v219, 0.0
      %v223 = vsel %vm221, %v220, 0.0
      %v224 = vadd.f32 %v222, %v223
      %225 = vadd.xlane.f32.xlu0 %v224
      %v226 = vpop.xlane.xlu0 %225
      %v227 = vrot.slane %v226, 4
      %v228 = vadd.f32 %v226, %v227
      %v229 = vrot.slane %v228, 2
      %v230 = vadd.f32 %v228, %v229
      %v231 = vrot.slane %v230, 1
      %v232 = vadd.f32 %v230, %v231
      %s233 = vtos %v232
      %v234 = vrcp.pop 512.0
      %v235 = vmul.f32 512.0, %v234
      %v236 = vsub.f32 1.0, %v235
      %v237 = vmul.f32 %v234, %v236
      %v238 = vadd.f32 %v234, %v237
      %vm239 = vweird.f32 %v234
      %v240 = vsel %vm239, %v234, %v238
      %s241 = vtos %v240
      %s242 = smul.f32 %s233, %s241
      %v243 = vstv %s242
      %v244 = vsub.f32 %v219, %v243
      %v245 = vsub.f32 %v220, %v243
      %v246 = vmul.f32 %v244, %v244
      %v247 = vmul.f32 %v245, %v245
      %v248 = vsel %vm221, %v246, 0.0
      %v249 = vsel %vm221, %v247, 0.0
      %v250 = vadd.f32 %v248, %v249
      %251 = vadd.xlane.f32.xlu0 %v250
      %v252 = vpop.xlane.xlu0 %251
      %v253 = vrot.slane %v252, 4
      %v254 = vadd.f32 %v252, %v253
      %v255 = vrot.slane %v254, 2
      %v256 = vadd.f32 %v254, %v255
      %v257 = vrot.slane %v256, 1
      %v258 = vadd.f32 %v256, %v257
      %s259 = vtos %v258
      %v260 = vrcp.pop 512.0
      %v261 = vmul.f32 512.0, %v260
      %v262 = vsub.f32 1.0, %v261
      %v263 = vmul.f32 %v260, %v262
      %v264 = vadd.f32 %v260, %v263
      %vm265 = vweird.f32 %v260
      %v266 = vsel %vm265, %v260, %v264
      %s267 = vtos %v266
      %s268 = smul.f32 %s259, %s267
      %s269 = sld [smem:[#allocation5]]
      %s270 = sadd.f32 %s268, 1e-05
      %v271 = vstv %s270
      %v272 = vrsqrt.pop %v271
      %v273 = vmul.f32 %v272, %v271
      %v274 = vmul.f32 %v273, %v272
      %v275 = vmul.f32 0.5, %v274
      %v276 = vsub.f32 1.5, %v275
      %v277 = vmul.f32 %v272, %v276
      %vm278 = vweird.f32 %v271
      %vm279 = vweird.f32 %v272
      %vm280 = vmor %vm278, %vm279
      %v281 = vsel %vm280, %v272, %v277
      %s282 = vtos %v281
      %s283 = smul.f32 %s269, %s282
      %v284 = vstv %s283
      %v285 = vmul.f32 %v244, %v284
      %v286 = vmul.f32 %v245, %v284
      %s287 = sld [smem:[#allocation5 + $0x1]]
      %v288 = vstv %s287
      %v289 = vadd.f32 %v285, %v288
      %v290 = vadd.f32 %v286, %v288
      %291 = vst.msk [vmem:[%s3] sm:$0xff] %vm221, %v289
      %292 = vst.msk [vmem:[%s3 + $0x8] sm:$0xff] %vm221, %v290
    $region25: #{depthwise_separable_conv.1} parent=1 // pred_fallthru
      _
    // Predicated region
    $region26: #{depthwise_separable_conv.1} parent=1 // pred_check
      _
    $region27: #{depthwise_separable_conv.1} parent=1 // pred_check_branch
      %294 = sbr.rel (0) target = $region29
    $region28: #{depthwise_separable_conv.1} parent=1 // pred_region
      _
    $region29: #{depthwise_separable_conv.1} parent=1 // pred_fallthru
      _
    // Predicated region
    $region30: #{depthwise_separable_conv.1} parent=1 // pred_check
      _
    $region31: #{depthwise_separable_conv.1} parent=1 // pred_check_branch
      %296 = sbr.rel (0) target = $region33
    $region32: #{depthwise_separable_conv.1} parent=1 // pred_region
      _
    $region33: #{depthwise_separable_conv.1} parent=1 // pred_fallthru
      _
    %297 = vsyncpa [#allocation6], 1

</llo_original>
